<compile_context>
chip_gen: v7x
topology: tpu7x:2x2x1
jax: 0.10.0
libtpu: 0.0.40
codegen_flags: <defaults>
</compile_context>

<pallas_src>
import math
import functools

import jax
import jax.numpy as jnp
import numpy as np
from jax.experimental import pallas as pl
from jax.experimental.pallas import tpu as pltpu


# -------------------- Pallas kernel --------------------
def temporal_attention_kernel(x_ref, pe_ref, wqkv_ref, bqkv_ref, wo_ref, bo_ref,
                              bias_ref, o_ref, *, num_heads, d_k, inv_scale):
    d_model = num_heads * d_k

    # Positional-encoding add (kept in-kernel), on the flattened (B*S, D) slab.
    x = x_ref[...] + pe_ref[...]                                   # (G, D) f32

    # Fused Q/K/V projection: one (G, D) @ (D, 3D) MXU matmul + one bias add.
    qkv = jnp.dot(x, wqkv_ref[...], preferred_element_type=jnp.float32) + bqkv_ref[...]

    # Head split: static lane slices stacked onto a new leading head axis -> (H, G, d_k).
    # All attention math below is head-batched; no per-head matmuls, no lane concat.
    def split_heads(col0):
        return jnp.stack(
            [qkv[:, col0 + h * d_k: col0 + (h + 1) * d_k] for h in range(num_heads)],
            axis=0)
    q = split_heads(0)
    k = split_heads(d_model)
    v = split_heads(2 * d_model)

    # Head-batched scaled-dot-product attention over the flattened batch*seq axis.
    # bias_ref is 0 on same-batch (and user-unmasked) pairs and -1e9 elsewhere, so the
    # row softmax is exactly the per-batch softmax of the reference module.
    scores = jnp.einsum('hqe,hke->hqk', q, k, preferred_element_type=jnp.float32)
    scores = scores * inv_scale + bias_ref[...][None, :, :]        # (H, G, G)
    scores = scores - jnp.max(scores, axis=-1, keepdims=True)      # stable softmax
    p = jnp.exp(scores)
    p = p * pl.reciprocal(jnp.sum(p, axis=-1, keepdims=True), approx=True)

    attn = jnp.einsum('hqk,hke->hqe', p, v, preferred_element_type=jnp.float32)  # (H, G, dk)

    # Output projection against (H, d_k, D) weights, summed over heads.
    # Equivalent to concat(heads) @ Wo^T + bo, without the lane-offset concatenate.
    out = jnp.sum(
        jnp.einsum('hqe,hed->hqd', attn, wo_ref[...], preferred_element_type=jnp.float32),
        axis=0) + bo_ref[...]
    o_ref[...] = out.astype(o_ref.dtype)


# -------------------- wrapper --------------------
def build_attn_bias(batch, seq, mask=None):
    """Additive (B*S, B*S) bias: 0 on attended pairs, -1e9 on cross-batch / masked pairs."""
    g = batch * seq
    batch_idx = jnp.arange(g, dtype=jnp.int32) // seq
    same = batch_idx[:, None] == batch_idx[None, :]
    bias = jnp.where(same, 0.0, -1e9).astype(jnp.float32)
    if mask is not None:
        m = jnp.asarray(mask)
        if m.ndim == 4:                      # (B, 1, S, S) head-shared
            m = m[:, 0]
        if m.ndim == 2:                      # (S, S) shared across batch
            m = jnp.broadcast_to(m[None], (batch, seq, seq))
        user = jnp.where(m == 0, -1e9, 0.0).astype(jnp.float32)     # (B, S, S)
        eye_b = jnp.eye(batch, dtype=jnp.float32)
        user_full = jnp.einsum('bc,bij->bicj', eye_b, user).reshape(g, g)
        bias = bias + user_full
    return bias


def temporal_attention(x, params, pe_table, num_heads, mask=None):
    """x: (B, S, D) float32. pe_table: (max_seq_len, D). params: fused/reshaped weights."""
    b, s, d = x.shape
    d_k = d // num_heads
    g = b * s

    x2 = x.reshape(g, d)                                            # lane-dense (G, D) slab
    if s <= pe_table.shape[0]:
        pe2 = jnp.tile(pe_table[:s], (b, 1))                        # (G, D)
    else:                                                           # module skips PE if too long
        pe2 = jnp.zeros((g, d), jnp.float32)
    bias = build_attn_bias(b, s, mask)                              # (G, G)

    kernel = functools.partial(temporal_attention_kernel,
                               num_heads=num_heads, d_k=d_k,
                               inv_scale=1.0 / math.sqrt(d_k))
    vmem_spec = lambda: pl.BlockSpec(memory_space=pltpu.MemorySpace.VMEM)

    out2 = pl.pallas_call(
        kernel,
        out_shape=jax.ShapeDtypeStruct((g, d), x.dtype),
        in_specs=[vmem_spec() for _ in range(7)],   # whole arrays resident in VMEM, no grid
        out_specs=vmem_spec(),
    )(x2, pe2,
      params["wqkv_t"], params["bqkv"],
      params["wo_h"], params["bo"],
      bias)
    return out2.reshape(b, s, d)


# -------------------- glue: parameters / PE --------------------
def make_positional_encoding(max_seq_len, d_model):
    pe = np.zeros((max_seq_len, d_model), dtype=np.float32)
    position = np.arange(0, max_seq_len, dtype=np.float32)[:, None]
    div_term = np.exp(np.arange(0, d_model, 2, dtype=np.float32)
                      * -(math.log(10000.0) / d_model))
    pe[:, 0::2] = np.sin(position * div_term)
    pe[:, 1::2] = np.cos(position * div_term)
    return jnp.asarray(pe)                                          # (max_seq_len, d_model)


def init_params(key, d_model, num_heads):
    ks = jax.random.split(key, 8)

    def lin(kw, kb):
        # PyTorch Linear weight is (out, in); y = x @ W.T + b.
        w = jax.random.normal(kw, (d_model, d_model), jnp.float32) * 0.02
        b = jax.random.normal(kb, (d_model,), jnp.float32) * 0.02
        return w, b

    wq, bq = lin(ks[0], ks[1])
    wk, bk = lin(ks[2], ks[3])
    wv, bv = lin(ks[4], ks[5])
    wo, bo = lin(ks[6], ks[7])
    d_k = d_model // num_heads

    params = {
        "wqkv_t": jnp.concatenate([wq.T, wk.T, wv.T], axis=1),      # (D, 3D)
        "bqkv":   jnp.concatenate([bq, bk, bv])[None, :],           # (1, 3D)
        "wo_h":   wo.T.reshape(num_heads, d_k, d_model),            # (H, d_k, D)
        "bo":     bo[None, :],                                      # (1, D)
    }
    raw = {"wq": wq, "bq": bq, "wk": wk, "bk": bk,
           "wv": wv, "bv": bv, "wo": wo, "bo": bo}
    return params, raw


# -------------------- pure-JAX reference (verification) --------------------
def reference(x, pe_table, raw, num_heads, mask=None):
    b, s, d = x.shape
    d_k = d // num_heads
    xp = x + pe_table[:s][None]
    q = xp @ raw["wq"].T + raw["bq"]
    k = xp @ raw["wk"].T + raw["bk"]
    v = xp @ raw["wv"].T + raw["bv"]

    def split(t):
        return t.reshape(b, s, num_heads, d_k).transpose(0, 2, 1, 3)

    Q, K, V = split(q), split(k), split(v)
    scores = jnp.einsum("bhqe,bhke->bhqk", Q, K) / math.sqrt(d_k)
    if mask is not None:
        m = jnp.asarray(mask)
        if m.ndim == 2:
            m = jnp.broadcast_to(m[None], (b, s, s))
        if m.ndim == 3:
            m = m[:, None]
        scores = jnp.where(m == 0, -1e9, scores)
    w = jax.nn.softmax(scores, axis=-1)
    a = jnp.einsum("bhqk,bhkd->bhqd", w, V)
    a = a.transpose(0, 2, 1, 3).reshape(b, s, d)
    return a @ raw["wo"].T + raw["bo"]


if __name__ == "__main__":
    B, S, D_MODEL, NUM_HEADS, MAX_SEQ_LEN = 2, 8, 32, 4, 64

    key = jax.random.PRNGKey(0)
    k_x, k_p = jax.random.split(key)

    x = jax.random.normal(k_x, (B, S, D_MODEL), jnp.float32)
    params, raw = init_params(k_p, D_MODEL, NUM_HEADS)
    pe = make_positional_encoding(MAX_SEQ_LEN, D_MODEL)

    # mask=None path (the primary forward)
    out = jax.block_until_ready(temporal_attention(x, params, pe, NUM_HEADS))
    ref = reference(x, pe, raw, NUM_HEADS)
    np.testing.assert_allclose(np.asarray(out), np.asarray(ref), rtol=5e-3, atol=5e-4)

    # masked path (maps torch masked_fill(mask == 0, -1e9)) — causal demo mask
    causal = jnp.tril(jnp.ones((S, S), jnp.int32))
    out_m = jax.block_until_ready(temporal_attention(x, params, pe, NUM_HEADS, mask=causal))
    ref_m = reference(x, pe, raw, NUM_HEADS, mask=causal)
    np.testing.assert_allclose(np.asarray(out_m), np.asarray(ref_m), rtol=5e-3, atol=5e-4)

    print("KERNEL_OK")
</pallas_src>

<mosaic_0001>
module attributes {stable_mosaic.version = 11 : i64} {
  func.func @temporal_attention_kernel(%arg0: memref<16x32xf32, #tpu.memory_space<vmem>>, %arg1: memref<16x32xf32, #tpu.memory_space<vmem>>, %arg2: memref<32x96xf32, #tpu.memory_space<vmem>>, %arg3: memref<1x96xf32, #tpu.memory_space<vmem>>, %arg4: memref<4x8x32xf32, #tpu.memory_space<vmem>>, %arg5: memref<1x32xf32, #tpu.memory_space<vmem>>, %arg6: memref<16x16xf32, #tpu.memory_space<vmem>>, %arg7: memref<16x32xf32, #tpu.memory_space<vmem>>) attributes {dimension_semantics = [], scalar_prefetch = 0 : i64, scratch_operands = 0 : i64, tpu.core_type = #tpu.core_type<tc>} {
    %c0 = arith.constant 0 : index
    %c0_0 = arith.constant 0 : index
    %0 = vector.load %arg0[%c0, %c0_0] : memref<16x32xf32, #tpu.memory_space<vmem>>, vector<16x32xf32>
    %c0_1 = arith.constant 0 : index
    %c0_2 = arith.constant 0 : index
    %1 = vector.load %arg1[%c0_1, %c0_2] : memref<16x32xf32, #tpu.memory_space<vmem>>, vector<16x32xf32>
    %2 = arith.addf %0, %1 : vector<16x32xf32>
    %c0_3 = arith.constant 0 : index
    %c0_4 = arith.constant 0 : index
    %3 = vector.load %arg2[%c0_3, %c0_4] : memref<32x96xf32, #tpu.memory_space<vmem>>, vector<32x96xf32>
    %cst = arith.constant dense<0.000000e+00> : vector<16x96xf32>
    %4 = tpu.matmul %2, %3, %cst {dimension_numbers = #tpu.dot_dimension_numbers<[1], [0], [0], [1], [0, 0, 1, 1], [], []>} : vector<16x32xf32>, vector<32x96xf32>, vector<16x96xf32> -> vector<16x96xf32>
    %c0_5 = arith.constant 0 : index
    %c0_6 = arith.constant 0 : index
    %5 = vector.load %arg3[%c0_5, %c0_6] : memref<1x96xf32, #tpu.memory_space<vmem>>, vector<1x96xf32>
    %6 = vector.broadcast %5 : vector<1x96xf32> to vector<16x96xf32>
    %7 = arith.addf %4, %6 : vector<16x96xf32>
    %8 = vector.extract_strided_slice %7 {offsets = [0, 0], sizes = [16, 8], strides = [1, 1]} : vector<16x96xf32> to vector<16x8xf32>
    %9 = vector.extract_strided_slice %7 {offsets = [0, 8], sizes = [16, 8], strides = [1, 1]} : vector<16x96xf32> to vector<16x8xf32>
    %10 = vector.extract_strided_slice %7 {offsets = [0, 16], sizes = [16, 8], strides = [1, 1]} : vector<16x96xf32> to vector<16x8xf32>
    %11 = vector.extract_strided_slice %7 {offsets = [0, 24], sizes = [16, 8], strides = [1, 1]} : vector<16x96xf32> to vector<16x8xf32>
    %12 = vector.shape_cast %8 : vector<16x8xf32> to vector<1x16x8xf32>
    %13 = vector.shape_cast %9 : vector<16x8xf32> to vector<1x16x8xf32>
    %14 = vector.shape_cast %10 : vector<16x8xf32> to vector<1x16x8xf32>
    %15 = vector.shape_cast %11 : vector<16x8xf32> to vector<1x16x8xf32>
    %16 = tpu.concatenate %12, %13, %14, %15 in 0 : vector<1x16x8xf32>, vector<1x16x8xf32>, vector<1x16x8xf32>, vector<1x16x8xf32> -> vector<4x16x8xf32>
    %17 = vector.extract_strided_slice %7 {offsets = [0, 32], sizes = [16, 8], strides = [1, 1]} : vector<16x96xf32> to vector<16x8xf32>
    %18 = vector.extract_strided_slice %7 {offsets = [0, 40], sizes = [16, 8], strides = [1, 1]} : vector<16x96xf32> to vector<16x8xf32>
    %19 = vector.extract_strided_slice %7 {offsets = [0, 48], sizes = [16, 8], strides = [1, 1]} : vector<16x96xf32> to vector<16x8xf32>
    %20 = vector.extract_strided_slice %7 {offsets = [0, 56], sizes = [16, 8], strides = [1, 1]} : vector<16x96xf32> to vector<16x8xf32>
    %21 = vector.shape_cast %17 : vector<16x8xf32> to vector<1x16x8xf32>
    %22 = vector.shape_cast %18 : vector<16x8xf32> to vector<1x16x8xf32>
    %23 = vector.shape_cast %19 : vector<16x8xf32> to vector<1x16x8xf32>
    %24 = vector.shape_cast %20 : vector<16x8xf32> to vector<1x16x8xf32>
    %25 = tpu.concatenate %21, %22, %23, %24 in 0 : vector<1x16x8xf32>, vector<1x16x8xf32>, vector<1x16x8xf32>, vector<1x16x8xf32> -> vector<4x16x8xf32>
    %26 = vector.extract_strided_slice %7 {offsets = [0, 64], sizes = [16, 8], strides = [1, 1]} : vector<16x96xf32> to vector<16x8xf32>
    %27 = vector.extract_strided_slice %7 {offsets = [0, 72], sizes = [16, 8], strides = [1, 1]} : vector<16x96xf32> to vector<16x8xf32>
    %28 = vector.extract_strided_slice %7 {offsets = [0, 80], sizes = [16, 8], strides = [1, 1]} : vector<16x96xf32> to vector<16x8xf32>
    %29 = vector.extract_strided_slice %7 {offsets = [0, 88], sizes = [16, 8], strides = [1, 1]} : vector<16x96xf32> to vector<16x8xf32>
    %30 = vector.shape_cast %26 : vector<16x8xf32> to vector<1x16x8xf32>
    %31 = vector.shape_cast %27 : vector<16x8xf32> to vector<1x16x8xf32>
    %32 = vector.shape_cast %28 : vector<16x8xf32> to vector<1x16x8xf32>
    %33 = vector.shape_cast %29 : vector<16x8xf32> to vector<1x16x8xf32>
    %34 = tpu.concatenate %30, %31, %32, %33 in 0 : vector<1x16x8xf32>, vector<1x16x8xf32>, vector<1x16x8xf32>, vector<1x16x8xf32> -> vector<4x16x8xf32>
    "tpu.trace_start"() <{level = 10 : i32, message = "hqe,hke->hqk"}> : () -> ()
    %cst_7 = arith.constant dense<0.000000e+00> : vector<4x16x16xf32>
    %35 = tpu.matmul %16, %25, %cst_7 {dimension_numbers = #tpu.dot_dimension_numbers<[2], [2], [1], [1], [0, 0, 0, 1, 1, 1], [0], [0]>} : vector<4x16x8xf32>, vector<4x16x8xf32>, vector<4x16x16xf32> -> vector<4x16x16xf32>
    "tpu.trace_stop"() : () -> ()
    %cst_8 = arith.constant 0.353553385 : f32
    %36 = vector.broadcast %cst_8 : f32 to vector<4x16x16xf32>
    %37 = arith.mulf %35, %36 : vector<4x16x16xf32>
    %c0_9 = arith.constant 0 : index
    %c0_10 = arith.constant 0 : index
    %38 = vector.load %arg6[%c0_9, %c0_10] : memref<16x16xf32, #tpu.memory_space<vmem>>, vector<16x16xf32>
    %39 = vector.shape_cast %38 : vector<16x16xf32> to vector<1x16x16xf32>
    %40 = vector.broadcast %39 : vector<1x16x16xf32> to vector<4x16x16xf32>
    %41 = arith.addf %37, %40 : vector<4x16x16xf32>
    %cst_11 = arith.constant dense<0xFF800000> : vector<4x16xf32>
    %42 = vector.multi_reduction <maximumf>, %41, %cst_11 [2] : vector<4x16x16xf32> to vector<4x16xf32>
    %43 = vector.shape_cast %42 : vector<4x16xf32> to vector<4x16x1xf32>
    %44 = vector.broadcast %43 : vector<4x16x1xf32> to vector<4x16x16xf32>
    %45 = arith.subf %41, %44 : vector<4x16x16xf32>
    %46 = math.exp %45 : vector<4x16x16xf32>
    %cst_12 = arith.constant dense<0.000000e+00> : vector<4x16xf32>
    %47 = vector.multi_reduction <add>, %46, %cst_12 [2] : vector<4x16x16xf32> to vector<4x16xf32>
    %48 = vector.shape_cast %47 : vector<4x16xf32> to vector<4x16x1xf32>
    %49 = tpu.reciprocal %48 {approx = true} : vector<4x16x1xf32> -> vector<4x16x1xf32>
    %50 = vector.broadcast %49 : vector<4x16x1xf32> to vector<4x16x16xf32>
    %51 = arith.mulf %46, %50 : vector<4x16x16xf32>
    "tpu.trace_start"() <{level = 10 : i32, message = "hqk,hke->hqe"}> : () -> ()
    %cst_13 = arith.constant dense<0.000000e+00> : vector<4x16x8xf32>
    %52 = tpu.matmul %51, %34, %cst_13 {dimension_numbers = #tpu.dot_dimension_numbers<[2], [1], [1], [2], [0, 0, 0, 1, 1, 2], [0], [0]>} : vector<4x16x16xf32>, vector<4x16x8xf32>, vector<4x16x8xf32> -> vector<4x16x8xf32>
    "tpu.trace_stop"() : () -> ()
    %c0_14 = arith.constant 0 : index
    %c0_15 = arith.constant 0 : index
    %c0_16 = arith.constant 0 : index
    %53 = vector.load %arg4[%c0_14, %c0_15, %c0_16] : memref<4x8x32xf32, #tpu.memory_space<vmem>>, vector<4x8x32xf32>
    "tpu.trace_start"() <{level = 10 : i32, message = "hqe,hed->hqd"}> : () -> ()
    %cst_17 = arith.constant dense<0.000000e+00> : vector<4x16x32xf32>
    %54 = tpu.matmul %52, %53, %cst_17 {dimension_numbers = #tpu.dot_dimension_numbers<[2], [1], [1], [2], [0, 0, 0, 1, 1, 2], [0], [0]>} : vector<4x16x8xf32>, vector<4x8x32xf32>, vector<4x16x32xf32> -> vector<4x16x32xf32>
    "tpu.trace_stop"() : () -> ()
    %cst_18 = arith.constant dense<0.000000e+00> : vector<16x32xf32>
    %55 = vector.multi_reduction <add>, %54, %cst_18 [0] : vector<4x16x32xf32> to vector<16x32xf32>
    %c0_19 = arith.constant 0 : index
    %c0_20 = arith.constant 0 : index
    %56 = vector.load %arg5[%c0_19, %c0_20] : memref<1x32xf32, #tpu.memory_space<vmem>>, vector<1x32xf32>
    %57 = vector.broadcast %56 : vector<1x32xf32> to vector<16x32xf32>
    %58 = arith.addf %55, %57 : vector<16x32xf32>
    %c0_21 = arith.constant 0 : index
    %c0_22 = arith.constant 0 : index
    %59 = vector.load %arg7[%c0_21, %c0_22] : memref<16x32xf32, #tpu.memory_space<vmem>>, vector<16x32xf32>
    tpu.vector_store %arg7[%c0_21, %c0_22], %58 {strides = array<i32>} : memref<16x32xf32, #tpu.memory_space<vmem>>, vector<16x32xf32>,
    return
  }
}

</mosaic_0001>

<llo_original>
// kernel: tpu_custom_call.1
$region0: #{tpu_custom_call.1}
  #allocation0 [shape = 'u32[]', space=smem, size = 0x4, offset = 0x4, fixed_abs, tag = 'smem constant byte address 0x4 - core index']
  #allocation1 [shape = 'u32[144,128]{1,0:T(1,128)}', space=vmem, size = 0x12000, scoped, tag = 'internal scratch']
  %s0 = inlined_call_operand.hbm [shape: f32[16,32], index: 0, kind: input, shape index: {}]
  %s1 = inlined_call_operand.hbm [shape: f32[16,32], index: 1, kind: input, shape index: {}]
  %s2 = inlined_call_operand.hbm [shape: f32[32,96], index: 2, kind: input, shape index: {}]
  %s3 = inlined_call_operand.vmem [shape: f32[1,96], index: 3, kind: input, shape index: {}]
  %s4 = inlined_call_operand.hbm [shape: f32[4,8,32], index: 4, kind: input, shape index: {}]
  %s5 = inlined_call_operand.vmem [shape: f32[1,32], index: 5, kind: input, shape index: {}]
  %s6 = inlined_call_operand.vmem [shape: f32[16,16], index: 6, kind: input, shape index: {}]
  %s7 = inlined_call_operand.hbm [shape: f32[16,32], index: 7, kind: output, shape index: {}]
  %s8 = sld [smem:[#allocation0]]
  $region54: #{tpu_custom_call.1} parent=0
    _
  %s10 = ssub.s32 1, %s8
  %s11 = scalar_select 0, %s10, %s8
  $region1: #{tpu_custom_call.1} parent=0
    #allocation2 [shape = 'u8[8192]{0}', space=vmem, size = 0x2000, scoped, tag = 'input window, operand 0, single buffered']
    #allocation3 [shape = 's32[1]{0}', space=sflag, size = 0x4, scoped, tag = 'scoped memory for tpu_custom_call.1']
    #allocation4 [shape = 's32[1]{0}', space=sflag, size = 0x4, scoped, tag = 'scoped memory for tpu_custom_call.1']
    #allocation5 [shape = 'u8[8192]{0}', space=vmem, size = 0x2000, scoped, tag = 'input window, operand 1, single buffered']
    #allocation6 [shape = 's32[1]{0}', space=sflag, size = 0x4, scoped, tag = 'scoped memory for tpu_custom_call.1']
    #allocation7 [shape = 'u8[16384]{0}', space=vmem, size = 0x4000, scoped, tag = 'input window, operand 2, single buffered']
    #allocation8 [shape = 'u8[16384]{0}', space=vmem, size = 0x4000, scoped, tag = 'input window, operand 4, single buffered']
    #allocation9 [shape = 's32[1]{0}', space=sflag, size = 0x4, scoped, tag = 'scoped memory for tpu_custom_call.1']
    #allocation10 [shape = 'u8[8192]{0}', space=vmem, size = 0x2000, scoped, tag = 'output window, operand 0, single buffered']
    %12 = vsyncpa [#allocation3], 0
    %13 = vsyncpa [#allocation6], 0
    %14 = vsyncpa [#allocation9], 0
    %15 = vsyncpa [#allocation4], 0
    // Predicated region
    $region2: #{tpu_custom_call.1} parent=1 // pred_check
      _
    $region3: #{tpu_custom_call.1} parent=1 // pred_check_branch
      %17 = sbr.rel (0) target = $region5
    $region4: #{tpu_custom_call.1} parent=1 // pred_region
      %s19 = ssub.s32 256, 256
      %20 = vsyncadd [#allocation3], %s19
      %s21 = sshll.u32 [#allocation2], 4
      %s22 = int_to_ptr.vmem [resolvable:$true] %s21
      %27 = dma.hbm_to_vmem [thread:$0]  %s0, 256, %s22, [#allocation3], 128, 128, 8
    $region5: #{tpu_custom_call.1} parent=1 // pred_fallthru
      _
    // Predicated region
    $region6: #{tpu_custom_call.1} parent=1 // pred_check
      _
    $region7: #{tpu_custom_call.1} parent=1 // pred_check_branch
      %29 = sbr.rel (0) target = $region9
    $region8: #{tpu_custom_call.1} parent=1 // pred_region
      %s31 = ssub.s32 256, 256
      %32 = vsyncadd [#allocation6], %s31
      %s33 = sshll.u32 [#allocation5], 4
      %s34 = int_to_ptr.vmem [resolvable:$true] %s33
      %39 = dma.hbm_to_vmem [thread:$0]  %s1, 256, %s34, [#allocation6], 128, 128, 8
    $region9: #{tpu_custom_call.1} parent=1 // pred_fallthru
      _
    // Predicated region
    $region10: #{tpu_custom_call.1} parent=1 // pred_check
      _
    $region11: #{tpu_custom_call.1} parent=1 // pred_check_branch
      %41 = sbr.rel (0) target = $region13
    $region12: #{tpu_custom_call.1} parent=1 // pred_region
      %s43 = ssub.s32 512, 512
      %44 = vsyncadd [#allocation6], %s43
      %s45 = sshll.u32 [#allocation7], 4
      %s46 = int_to_ptr.vmem [resolvable:$true] %s45
      %51 = dma.hbm_to_vmem [thread:$0]  %s2, 512, %s46, [#allocation6], 128, 128, 8
    $region13: #{tpu_custom_call.1} parent=1 // pred_fallthru
      _
    // Predicated region
    $region14: #{tpu_custom_call.1} parent=1 // pred_check
      _
    $region15: #{tpu_custom_call.1} parent=1 // pred_check_branch
      %53 = sbr.rel (0) target = $region17
    $region16: #{tpu_custom_call.1} parent=1 // pred_region
      _
    $region17: #{tpu_custom_call.1} parent=1 // pred_fallthru
      _
    // Predicated region
    $region18: #{tpu_custom_call.1} parent=1 // pred_check
      _
    $region19: #{tpu_custom_call.1} parent=1 // pred_check_branch
      %55 = sbr.rel (0) target = $region21
    $region20: #{tpu_custom_call.1} parent=1 // pred_region
      %s57 = ssub.s32 512, 512
      %58 = vsyncadd [#allocation9], %s57
      %s59 = sshll.u32 [#allocation8], 4
      %s60 = int_to_ptr.vmem [resolvable:$true] %s59
      %65 = dma.hbm_to_vmem [thread:$0]  %s4, 512, %s60, [#allocation9], 128, 128, 8
    $region21: #{tpu_custom_call.1} parent=1 // pred_fallthru
      _
    // Predicated region
    $region22: #{tpu_custom_call.1} parent=1 // pred_check
      _
    $region23: #{tpu_custom_call.1} parent=1 // pred_check_branch
      %67 = sbr.rel (0) target = $region25
    $region24: #{tpu_custom_call.1} parent=1 // pred_region
      _
    $region25: #{tpu_custom_call.1} parent=1 // pred_fallthru
      _
    // Predicated region
    $region26: #{tpu_custom_call.1} parent=1 // pred_check
      _
    $region27: #{tpu_custom_call.1} parent=1 // pred_check_branch
      %69 = sbr.rel (0) target = $region29
    $region28: #{tpu_custom_call.1} parent=1 // pred_region
      _
    $region29: #{tpu_custom_call.1} parent=1 // pred_fallthru
      _
    // Predicated region
    $region30: #{tpu_custom_call.1} parent=1 // pred_check
      _
    $region31: #{tpu_custom_call.1} parent=1 // pred_check_branch
      %71 = sbr.rel (0) target = $region33
    $region32: #{tpu_custom_call.1} parent=1 // pred_region
      %72 = dma.done [#allocation3], 256
    $region33: #{tpu_custom_call.1} parent=1 // pred_fallthru
      _
    // Predicated region
    $region34: #{tpu_custom_call.1} parent=1 // pred_check
      _
    $region35: #{tpu_custom_call.1} parent=1 // pred_check_branch
      %74 = sbr.rel (0) target = $region37
    $region36: #{tpu_custom_call.1} parent=1 // pred_region
      %75 = dma.done [#allocation6], 256
    $region37: #{tpu_custom_call.1} parent=1 // pred_fallthru
      _
    // Predicated region
    $region38: #{tpu_custom_call.1} parent=1 // pred_check
      _
    $region39: #{tpu_custom_call.1} parent=1 // pred_check_branch
      %77 = sbr.rel (0) target = $region41
    $region40: #{tpu_custom_call.1} parent=1 // pred_region
      %78 = dma.done [#allocation6], 512
    $region41: #{tpu_custom_call.1} parent=1 // pred_fallthru
      _
    // Predicated region
    $region42: #{tpu_custom_call.1} parent=1 // pred_check
      _
    $region43: #{tpu_custom_call.1} parent=1 // pred_check_branch
      %80 = sbr.rel (0) target = $region45
    $region44: #{tpu_custom_call.1} parent=1 // pred_region
      %81 = dma.done [#allocation9], 512
    $region45: #{tpu_custom_call.1} parent=1 // pred_fallthru
      _
    %v82 = vld [vmem:[#allocation2] sm:$0xff]
    %v83 = vld [vmem:[#allocation2 + $0x8] sm:$0xff]
    %v84 = vld [vmem:[#allocation5] sm:$0xff]
    %v85 = vld [vmem:[#allocation5 + $0x8] sm:$0xff]
    %v86 = vadd.f32 %v82, %v84
    %v87 = vadd.f32 %v83, %v85
    %v88 = vld [vmem:[#allocation7] sm:$0xff]
    %v89 = vld [vmem:[#allocation7 + $0x8] sm:$0xff]
    %v90 = vld [vmem:[#allocation7 + $0x10] sm:$0xff]
    %v91 = vld [vmem:[#allocation7 + $0x18] sm:$0xff]
    %v92 = vld [vmem:[%s3] sm:$0x1]
    %v94 = vlaneseq
    %v95 = vshrl.u32 %v94, 7
    %v96 = vsub.s32 0, %v95
    %v97 = vrot.slane %v92, %v96
    %vm99 = vcmask 261120
    %v101 = vsel %vm99, %v86, 0
    %v104 = vsel %vm99, %v87, 0
    %106 = vmatprep.subr.mxu0 0.0
    %107 = vmatpush1.msra.mxu0 %v88
    %108 = vmatprep.subr.mxu0 0.0
    %109 = vmatpush1.msra.mxu0 %v89
    %110 = vmatprep.subr.mxu0 0.0
    %111 = vmatpush1.msra.mxu0 %v90
    %112 = vmatprep.subr.mxu0 0.0
    %113 = vmatpush1.msra.mxu0 %v91
    %114 = vmatprep.subr.mxu0 0.0
    %115 = vmatpush1.msra.mxu0 0.0
    %116 = vmatprep.subr.mxu0 0.0
    %117 = vmatpush1.msra.mxu0 0.0
    %118 = vmatprep.subr.mxu0 0.0
    %119 = vmatpush1.msra.mxu0 0.0
    %120 = vmatprep.subr.mxu0 0.0
    %121 = vmatpush1.msra.mxu0 0.0
    %122 = vmatprep.subr.mxu0 0.0
    %123 = vmatpush1.msra.mxu0 0.0
    %124 = vmatprep.subr.mxu0 0.0
    %125 = vmatpush1.msra.mxu0 0.0
    %126 = vmatprep.subr.mxu0 0.0
    %127 = vmatpush1.msra.mxu0 0.0
    %128 = vmatprep.subr.mxu0 0.0
    %129 = vmatpush1.msra.mxu0 0.0
    %130 = vmatprep.subr.mxu0 0.0
    %131 = vmatpush1.msra.mxu0 0.0
    %132 = vmatprep.subr.mxu0 0.0
    %133 = vmatpush1.msra.mxu0 0.0
    %134 = vmatprep.subr.mxu0 0.0
    %135 = vmatpush1.msra.mxu0 0.0
    %136 = vmatprep.subr.mxu0 0.0
    %137 = vmatpush1.msra.mxu0 0.0
    %138 = vmatprep.subr.mxu0 0.0
    %139 = vmatpush1.msra.mxu0 0.0
    %140 = vmatprep.subr.mxu0 0.0
    %141 = vmatpush1.msra.mxu0 0.0
    %142 = vmatprep.subr.mxu0 0.0
    %143 = vmatpush1.msra.mxu0 0.0
    %144 = vmatprep.subr.mxu0 0.0
    %145 = vmatpush1.msra.mxu0 0.0
    %146 = vmatprep.subr.mxu0 0.0
    %147 = vmatpush1.msra.mxu0 0.0
    %148 = vmatprep.subr.mxu0 0.0
    %149 = vmatpush1.msra.mxu0 0.0
    %150 = vmatprep.subr.mxu0 0.0
    %151 = vmatpush1.msra.mxu0 0.0
    %152 = vmatprep.subr.mxu0 0.0
    %153 = vmatpush1.msra.mxu0 0.0
    %154 = vmatprep.subr.mxu0 0.0
    %155 = vmatpush1.msra.mxu0 0.0
    %156 = vmatprep.subr.mxu0 0.0
    %157 = vmatpush1.msra.mxu0 0.0
    %158 = vmatprep.subr.mxu0 0.0
    %159 = vmatpush1.msra.mxu0 0.0
    %160 = vmatprep.subr.mxu0 0.0
    %161 = vmatpush1.msra.mxu0 0.0
    %162 = vmatprep.subr.mxu0 0.0
    %163 = vmatpush1.msra.mxu0 0.0
    %164 = vmatprep.subr.mxu0 0.0
    %165 = vmatpush1.msra.mxu0 0.0
    %166 = vmatprep.subr.mxu0 0.0
    %167 = vmatpush1.msra.mxu0 0.0
    %168 = vmatprep.subr.mxu0 0.0
    %169 = vmatpush1.msra.mxu0 0.0
    %170 = vmatprep.mubr.f32.mxu0 0.0
    %171 = vmatmul.mubr.f32.gmra.mrb[0].mxu0 %v101
    %v172 = vpop.f32.mrb[0].mxu0
    %v173 = vadd.f32 %v97, %v172
    %v174 = vpop.f32.mrb[0].mxu0
    %175 = vmatprep.mubr.f32.mxu0 0.0
    %176 = vmatmul.mubr.f32.gmra.mrb[0].mxu0 %v104
    %v177 = vpop.f32.mrb[0].mxu0
    %v178 = vadd.f32 %v97, %v177
    %v179 = vpop.f32.mrb[0].mxu0
    %180 = vdwg.mxu0
    %183 = vrot.lane.b32.xlu0 %v173, 120
    %v184 = vpop.permute.xlu0 %183
    %185 = vrot.lane.b32.xlu0 %v178, 120
    %v186 = vpop.permute.xlu0 %185
    %187 = vrot.lane.b32.xlu0 %v173, 112
    %v188 = vpop.permute.xlu0 %187
    %189 = vrot.lane.b32.xlu0 %v178, 112
    %v190 = vpop.permute.xlu0 %189
    %191 = vrot.lane.b32.xlu0 %v173, 104
    %v192 = vpop.permute.xlu0 %191
    %193 = vrot.lane.b32.xlu0 %v178, 104
    %v194 = vpop.permute.xlu0 %193
    %195 = vrot.lane.b32.xlu0 %v173, 96
    %v196 = vpop.permute.xlu0 %195
    %197 = vrot.lane.b32.xlu0 %v178, 96
    %v198 = vpop.permute.xlu0 %197
    %vm199 = vcmask 64512
    %v200 = vsel %vm199, %v173, 0
    %v202 = vsel %vm199, %v178, 0
    %v204 = vsel %vm199, %v196, 0
    %v206 = vsel %vm199, %v198, 0
    %208 = vmatprep.subr.mxu0 0.0
    %209 = vmatpush1.xpose.msra.mxu0 %v204
    %210 = vmatprep.subr.mxu0 0.0
    %211 = vmatpush1.xpose.msra.mxu0 %v206
    %212 = vmatprep.subr.mxu0 0.0
    %213 = vmatpush1.xpose.msra.mxu0 0.0
    %214 = vmatprep.subr.mxu0 0.0
    %215 = vmatpush1.xpose.msra.mxu0 0.0
    %216 = vmatprep.subr.mxu0 0.0
    %217 = vmatpush1.xpose.msra.mxu0 0.0
    %218 = vmatprep.subr.mxu0 0.0
    %219 = vmatpush1.xpose.msra.mxu0 0.0
    %220 = vmatprep.subr.mxu0 0.0
    %221 = vmatpush1.xpose.msra.mxu0 0.0
    %222 = vmatprep.subr.mxu0 0.0
    %223 = vmatpush1.xpose.msra.mxu0 0.0
    %224 = vmatprep.subr.mxu0 0.0
    %225 = vmatpush1.xpose.msra.mxu0 0.0
    %226 = vmatprep.subr.mxu0 0.0
    %227 = vmatpush1.xpose.msra.mxu0 0.0
    %228 = vmatprep.subr.mxu0 0.0
    %229 = vmatpush1.xpose.msra.mxu0 0.0
    %230 = vmatprep.subr.mxu0 0.0
    %231 = vmatpush1.xpose.msra.mxu0 0.0
    %232 = vmatprep.subr.mxu0 0.0
    %233 = vmatpush1.xpose.msra.mxu0 0.0
    %234 = vmatprep.subr.mxu0 0.0
    %235 = vmatpush1.xpose.msra.mxu0 0.0
    %236 = vmatprep.subr.mxu0 0.0
    %237 = vmatpush1.xpose.msra.mxu0 0.0
    %238 = vmatprep.subr.mxu0 0.0
    %239 = vmatpush1.xpose.msra.mxu0 0.0
    %240 = vmatprep.subr.mxu0 0.0
    %241 = vmatpush1.xpose.msra.mxu0 0.0
    %242 = vmatprep.subr.mxu0 0.0
    %243 = vmatpush1.xpose.msra.mxu0 0.0
    %244 = vmatprep.subr.mxu0 0.0
    %245 = vmatpush1.xpose.msra.mxu0 0.0
    %246 = vmatprep.subr.mxu0 0.0
    %247 = vmatpush1.xpose.msra.mxu0 0.0
    %248 = vmatprep.subr.mxu0 0.0
    %249 = vmatpush1.xpose.msra.mxu0 0.0
    %250 = vmatprep.subr.mxu0 0.0
    %251 = vmatpush1.xpose.msra.mxu0 0.0
    %252 = vmatprep.subr.mxu0 0.0
    %253 = vmatpush1.xpose.msra.mxu0 0.0
    %254 = vmatprep.subr.mxu0 0.0
    %255 = vmatpush1.xpose.msra.mxu0 0.0
    %256 = vmatprep.subr.mxu0 0.0
    %257 = vmatpush1.xpose.msra.mxu0 0.0
    %258 = vmatprep.subr.mxu0 0.0
    %259 = vmatpush1.xpose.msra.mxu0 0.0
    %260 = vmatprep.subr.mxu0 0.0
    %261 = vmatpush1.xpose.msra.mxu0 0.0
    %262 = vmatprep.subr.mxu0 0.0
    %263 = vmatpush1.xpose.msra.mxu0 0.0
    %264 = vmatprep.subr.mxu0 0.0
    %265 = vmatpush1.xpose.msra.mxu0 0.0
    %266 = vmatprep.subr.mxu0 0.0
    %267 = vmatpush1.xpose.msra.mxu0 0.0
    %268 = vmatprep.subr.mxu0 0.0
    %269 = vmatpush1.xpose.msra.mxu0 0.0
    %270 = vmatprep.subr.mxu0 0.0
    %271 = vmatpush1.xpose.msra.mxu0 0.0
    %272 = vmatprep.mubr.f32.mxu0 0.0
    %273 = vmatmul.mubr.f32.gmra.mrb[0].mxu0 %v200
    %v274 = vpop.f32.mrb[0].mxu0
    %v275 = vadd.f32 0.0, %v274
    %v276 = vpop.f32.mrb[0].mxu0
    %277 = vmatprep.mubr.f32.mxu0 0.0
    %278 = vmatmul.mubr.f32.gmra.mrb[0].mxu0 %v202
    %v279 = vpop.f32.mrb[0].mxu0
    %v280 = vadd.f32 0.0, %v279
    %v281 = vpop.f32.mrb[0].mxu0
    %282 = vdwg.mxu0
    %283 = vrot.lane.b32.xlu0 %v184, 96
    %v284 = vpop.permute.xlu0 %283
    %285 = vrot.lane.b32.xlu0 %v186, 96
    %v286 = vpop.permute.xlu0 %285
    %v287 = vsel %vm199, %v184, 0
    %v289 = vsel %vm199, %v186, 0
    %v291 = vsel %vm199, %v284, 0
    %v293 = vsel %vm199, %v286, 0
    %295 = vmatprep.subr.mxu0 0.0
    %296 = vmatpush1.xpose.msra.mxu0 %v291
    %297 = vmatprep.subr.mxu0 0.0
    %298 = vmatpush1.xpose.msra.mxu0 %v293
    %299 = vmatprep.subr.mxu0 0.0
    %300 = vmatpush1.xpose.msra.mxu0 0.0
    %301 = vmatprep.subr.mxu0 0.0
    %302 = vmatpush1.xpose.msra.mxu0 0.0
    %303 = vmatprep.subr.mxu0 0.0
    %304 = vmatpush1.xpose.msra.mxu0 0.0
    %305 = vmatprep.subr.mxu0 0.0
    %306 = vmatpush1.xpose.msra.mxu0 0.0
    %307 = vmatprep.subr.mxu0 0.0
    %308 = vmatpush1.xpose.msra.mxu0 0.0
    %309 = vmatprep.subr.mxu0 0.0
    %310 = vmatpush1.xpose.msra.mxu0 0.0
    %311 = vmatprep.subr.mxu0 0.0
    %312 = vmatpush1.xpose.msra.mxu0 0.0
    %313 = vmatprep.subr.mxu0 0.0
    %314 = vmatpush1.xpose.msra.mxu0 0.0
    %315 = vmatprep.subr.mxu0 0.0
    %316 = vmatpush1.xpose.msra.mxu0 0.0
    %317 = vmatprep.subr.mxu0 0.0
    %318 = vmatpush1.xpose.msra.mxu0 0.0
    %319 = vmatprep.subr.mxu0 0.0
    %320 = vmatpush1.xpose.msra.mxu0 0.0
    %321 = vmatprep.subr.mxu0 0.0
    %322 = vmatpush1.xpose.msra.mxu0 0.0
    %323 = vmatprep.subr.mxu0 0.0
    %324 = vmatpush1.xpose.msra.mxu0 0.0
    %325 = vmatprep.subr.mxu0 0.0
    %326 = vmatpush1.xpose.msra.mxu0 0.0
    %327 = vmatprep.subr.mxu0 0.0
    %328 = vmatpush1.xpose.msra.mxu0 0.0
    %329 = vmatprep.subr.mxu0 0.0
    %330 = vmatpush1.xpose.msra.mxu0 0.0
    %331 = vmatprep.subr.mxu0 0.0
    %332 = vmatpush1.xpose.msra.mxu0 0.0
    %333 = vmatprep.subr.mxu0 0.0
    %334 = vmatpush1.xpose.msra.mxu0 0.0
    %335 = vmatprep.subr.mxu0 0.0
    %336 = vmatpush1.xpose.msra.mxu0 0.0
    %337 = vmatprep.subr.mxu0 0.0
    %338 = vmatpush1.xpose.msra.mxu0 0.0
    %339 = vmatprep.subr.mxu0 0.0
    %340 = vmatpush1.xpose.msra.mxu0 0.0
    %341 = vmatprep.subr.mxu0 0.0
    %342 = vmatpush1.xpose.msra.mxu0 0.0
    %343 = vmatprep.subr.mxu0 0.0
    %344 = vmatpush1.xpose.msra.mxu0 0.0
    %345 = vmatprep.subr.mxu0 0.0
    %346 = vmatpush1.xpose.msra.mxu0 0.0
    %347 = vmatprep.subr.mxu0 0.0
    %348 = vmatpush1.xpose.msra.mxu0 0.0
    %349 = vmatprep.subr.mxu0 0.0
    %350 = vmatpush1.xpose.msra.mxu0 0.0
    %351 = vmatprep.subr.mxu0 0.0
    %352 = vmatpush1.xpose.msra.mxu0 0.0
    %353 = vmatprep.subr.mxu0 0.0
    %354 = vmatpush1.xpose.msra.mxu0 0.0
    %355 = vmatprep.subr.mxu0 0.0
    %356 = vmatpush1.xpose.msra.mxu0 0.0
    %357 = vmatprep.subr.mxu0 0.0
    %358 = vmatpush1.xpose.msra.mxu0 0.0
    %359 = vmatprep.mubr.f32.mxu0 0.0
    %360 = vmatmul.mubr.f32.gmra.mrb[0].mxu0 %v287
    %v361 = vpop.f32.mrb[0].mxu0
    %v362 = vadd.f32 0.0, %v361
    %v363 = vpop.f32.mrb[0].mxu0
    %364 = vmatprep.mubr.f32.mxu0 0.0
    %365 = vmatmul.mubr.f32.gmra.mrb[0].mxu0 %v289
    %v366 = vpop.f32.mrb[0].mxu0
    %v367 = vadd.f32 0.0, %v366
    %v368 = vpop.f32.mrb[0].mxu0
    %369 = vdwg.mxu0
    %370 = vrot.lane.b32.xlu0 %v188, 96
    %v371 = vpop.permute.xlu0 %370
    %372 = vrot.lane.b32.xlu0 %v190, 96
    %v373 = vpop.permute.xlu0 %372
    %v374 = vsel %vm199, %v188, 0
    %v376 = vsel %vm199, %v190, 0
    %v378 = vsel %vm199, %v371, 0
    %v380 = vsel %vm199, %v373, 0
    %382 = vmatprep.subr.mxu0 0.0
    %383 = vmatpush1.xpose.msra.mxu0 %v378
    %384 = vmatprep.subr.mxu0 0.0
    %385 = vmatpush1.xpose.msra.mxu0 %v380
    %386 = vmatprep.subr.mxu0 0.0
    %387 = vmatpush1.xpose.msra.mxu0 0.0
    %388 = vmatprep.subr.mxu0 0.0
    %389 = vmatpush1.xpose.msra.mxu0 0.0
    %390 = vmatprep.subr.mxu0 0.0
    %391 = vmatpush1.xpose.msra.mxu0 0.0
    %392 = vmatprep.subr.mxu0 0.0
    %393 = vmatpush1.xpose.msra.mxu0 0.0
    %394 = vmatprep.subr.mxu0 0.0
    %395 = vmatpush1.xpose.msra.mxu0 0.0
    %396 = vmatprep.subr.mxu0 0.0
    %397 = vmatpush1.xpose.msra.mxu0 0.0
    %398 = vmatprep.subr.mxu0 0.0
    %399 = vmatpush1.xpose.msra.mxu0 0.0
    %400 = vmatprep.subr.mxu0 0.0
    %401 = vmatpush1.xpose.msra.mxu0 0.0
    %402 = vmatprep.subr.mxu0 0.0
    %403 = vmatpush1.xpose.msra.mxu0 0.0
    %404 = vmatprep.subr.mxu0 0.0
    %405 = vmatpush1.xpose.msra.mxu0 0.0
    %406 = vmatprep.subr.mxu0 0.0
    %407 = vmatpush1.xpose.msra.mxu0 0.0
    %408 = vmatprep.subr.mxu0 0.0
    %409 = vmatpush1.xpose.msra.mxu0 0.0
    %410 = vmatprep.subr.mxu0 0.0
    %411 = vmatpush1.xpose.msra.mxu0 0.0
    %412 = vmatprep.subr.mxu0 0.0
    %413 = vmatpush1.xpose.msra.mxu0 0.0
    %414 = vmatprep.subr.mxu0 0.0
    %415 = vmatpush1.xpose.msra.mxu0 0.0
    %416 = vmatprep.subr.mxu0 0.0
    %417 = vmatpush1.xpose.msra.mxu0 0.0
    %418 = vmatprep.subr.mxu0 0.0
    %419 = vmatpush1.xpose.msra.mxu0 0.0
    %420 = vmatprep.subr.mxu0 0.0
    %421 = vmatpush1.xpose.msra.mxu0 0.0
    %422 = vmatprep.subr.mxu0 0.0
    %423 = vmatpush1.xpose.msra.mxu0 0.0
    %424 = vmatprep.subr.mxu0 0.0
    %425 = vmatpush1.xpose.msra.mxu0 0.0
    %426 = vmatprep.subr.mxu0 0.0
    %427 = vmatpush1.xpose.msra.mxu0 0.0
    %428 = vmatprep.subr.mxu0 0.0
    %429 = vmatpush1.xpose.msra.mxu0 0.0
    %430 = vmatprep.subr.mxu0 0.0
    %431 = vmatpush1.xpose.msra.mxu0 0.0
    %432 = vmatprep.subr.mxu0 0.0
    %433 = vmatpush1.xpose.msra.mxu0 0.0
    %434 = vmatprep.subr.mxu0 0.0
    %435 = vmatpush1.xpose.msra.mxu0 0.0
    %436 = vmatprep.subr.mxu0 0.0
    %437 = vmatpush1.xpose.msra.mxu0 0.0
    %438 = vmatprep.subr.mxu0 0.0
    %439 = vmatpush1.xpose.msra.mxu0 0.0
    %440 = vmatprep.subr.mxu0 0.0
    %441 = vmatpush1.xpose.msra.mxu0 0.0
    %442 = vmatprep.subr.mxu0 0.0
    %443 = vmatpush1.xpose.msra.mxu0 0.0
    %444 = vmatprep.subr.mxu0 0.0
    %445 = vmatpush1.xpose.msra.mxu0 0.0
    %446 = vmatprep.mubr.f32.mxu0 0.0
    %447 = vmatmul.mubr.f32.gmra.mrb[0].mxu0 %v374
    %v448 = vpop.f32.mrb[0].mxu0
    %v449 = vadd.f32 0.0, %v448
    %v450 = vpop.f32.mrb[0].mxu0
    %451 = vmatprep.mubr.f32.mxu0 0.0
    %452 = vmatmul.mubr.f32.gmra.mrb[0].mxu0 %v376
    %v453 = vpop.f32.mrb[0].mxu0
    %v454 = vadd.f32 0.0, %v453
    %v455 = vpop.f32.mrb[0].mxu0
    %456 = vdwg.mxu0
    %457 = vrot.lane.b32.xlu0 %v192, 96
    %v458 = vpop.permute.xlu0 %457
    %459 = vrot.lane.b32.xlu0 %v194, 96
    %v460 = vpop.permute.xlu0 %459
    %v461 = vsel %vm199, %v192, 0
    %v463 = vsel %vm199, %v194, 0
    %v465 = vsel %vm199, %v458, 0
    %v467 = vsel %vm199, %v460, 0
    %469 = vmatprep.subr.mxu0 0.0
    %470 = vmatpush1.xpose.msra.mxu0 %v465
    %471 = vmatprep.subr.mxu0 0.0
    %472 = vmatpush1.xpose.msra.mxu0 %v467
    %473 = vmatprep.subr.mxu0 0.0
    %474 = vmatpush1.xpose.msra.mxu0 0.0
    %475 = vmatprep.subr.mxu0 0.0
    %476 = vmatpush1.xpose.msra.mxu0 0.0
    %477 = vmatprep.subr.mxu0 0.0
    %478 = vmatpush1.xpose.msra.mxu0 0.0
    %479 = vmatprep.subr.mxu0 0.0
    %480 = vmatpush1.xpose.msra.mxu0 0.0
    %481 = vmatprep.subr.mxu0 0.0
    %482 = vmatpush1.xpose.msra.mxu0 0.0
    %483 = vmatprep.subr.mxu0 0.0
    %484 = vmatpush1.xpose.msra.mxu0 0.0
    %485 = vmatprep.subr.mxu0 0.0
    %486 = vmatpush1.xpose.msra.mxu0 0.0
    %487 = vmatprep.subr.mxu0 0.0
    %488 = vmatpush1.xpose.msra.mxu0 0.0
    %489 = vmatprep.subr.mxu0 0.0
    %490 = vmatpush1.xpose.msra.mxu0 0.0
    %491 = vmatprep.subr.mxu0 0.0
    %492 = vmatpush1.xpose.msra.mxu0 0.0
    %493 = vmatprep.subr.mxu0 0.0
    %494 = vmatpush1.xpose.msra.mxu0 0.0
    %495 = vmatprep.subr.mxu0 0.0
    %496 = vmatpush1.xpose.msra.mxu0 0.0
    %497 = vmatprep.subr.mxu0 0.0
    %498 = vmatpush1.xpose.msra.mxu0 0.0
    %499 = vmatprep.subr.mxu0 0.0
    %500 = vmatpush1.xpose.msra.mxu0 0.0
    %501 = vmatprep.subr.mxu0 0.0
    %502 = vmatpush1.xpose.msra.mxu0 0.0
    %503 = vmatprep.subr.mxu0 0.0
    %504 = vmatpush1.xpose.msra.mxu0 0.0
    %505 = vmatprep.subr.mxu0 0.0
    %506 = vmatpush1.xpose.msra.mxu0 0.0
    %507 = vmatprep.subr.mxu0 0.0
    %508 = vmatpush1.xpose.msra.mxu0 0.0
    %509 = vmatprep.subr.mxu0 0.0
    %510 = vmatpush1.xpose.msra.mxu0 0.0
    %511 = vmatprep.subr.mxu0 0.0
    %512 = vmatpush1.xpose.msra.mxu0 0.0
    %513 = vmatprep.subr.mxu0 0.0
    %514 = vmatpush1.xpose.msra.mxu0 0.0
    %515 = vmatprep.subr.mxu0 0.0
    %516 = vmatpush1.xpose.msra.mxu0 0.0
    %517 = vmatprep.subr.mxu0 0.0
    %518 = vmatpush1.xpose.msra.mxu0 0.0
    %519 = vmatprep.subr.mxu0 0.0
    %520 = vmatpush1.xpose.msra.mxu0 0.0
    %521 = vmatprep.subr.mxu0 0.0
    %522 = vmatpush1.xpose.msra.mxu0 0.0
    %523 = vmatprep.subr.mxu0 0.0
    %524 = vmatpush1.xpose.msra.mxu0 0.0
    %525 = vmatprep.subr.mxu0 0.0
    %526 = vmatpush1.xpose.msra.mxu0 0.0
    %527 = vmatprep.subr.mxu0 0.0
    %528 = vmatpush1.xpose.msra.mxu0 0.0
    %529 = vmatprep.subr.mxu0 0.0
    %530 = vmatpush1.xpose.msra.mxu0 0.0
    %531 = vmatprep.subr.mxu0 0.0
    %532 = vmatpush1.xpose.msra.mxu0 0.0
    %533 = vmatprep.mubr.f32.mxu0 0.0
    %534 = vmatmul.mubr.f32.gmra.mrb[0].mxu0 %v461
    %v535 = vpop.f32.mrb[0].mxu0
    %v536 = vadd.f32 0.0, %v535
    %v537 = vpop.f32.mrb[0].mxu0
    %538 = vmatprep.mubr.f32.mxu0 0.0
    %539 = vmatmul.mubr.f32.gmra.mrb[0].mxu0 %v463
    %v540 = vpop.f32.mrb[0].mxu0
    %v541 = vadd.f32 0.0, %v540
    %v542 = vpop.f32.mrb[0].mxu0
    %543 = vdwg.mxu0
    %v544 = vmul.f32 %v275, 0.35355338
    %v545 = vmul.f32 %v280, 0.35355338
    %v546 = vmul.f32 %v362, 0.35355338
    %v547 = vmul.f32 %v367, 0.35355338
    %v548 = vmul.f32 %v449, 0.35355338
    %v549 = vmul.f32 %v454, 0.35355338
    %v550 = vmul.f32 %v536, 0.35355338
    %v551 = vmul.f32 %v541, 0.35355338
    %v552 = vld [vmem:[%s6] sm:$0xff]
    %v553 = vld [vmem:[%s6 + $0x8] sm:$0xff]
    %v554 = vadd.f32 %v544, %v552
    %v555 = vadd.f32 %v545, %v553
    %v556 = vadd.f32 %v546, %v552
    %v557 = vadd.f32 %v547, %v553
    %v558 = vadd.f32 %v548, %v552
    %v559 = vadd.f32 %v549, %v553
    %v560 = vadd.f32 %v550, %v552
    %v561 = vadd.f32 %v551, %v553
    %vm562 = vcmask 130048
    %v563 = vsel %vm562, %v554, -inf
    %564 = vmax.xlane.f32.xlu0 %v563
    %v565 = vpop.xlane.xlu0 %564
    %v566 = vsel %vm562, %v555, -inf
    %567 = vmax.xlane.f32.xlu0 %v566
    %v568 = vpop.xlane.xlu0 %567
    %v569 = vsel %vm562, %v556, -inf
    %570 = vmax.xlane.f32.xlu0 %v569
    %v571 = vpop.xlane.xlu0 %570
    %v572 = vsel %vm562, %v557, -inf
    %573 = vmax.xlane.f32.xlu0 %v572
    %v574 = vpop.xlane.xlu0 %573
    %v575 = vsel %vm562, %v558, -inf
    %576 = vmax.xlane.f32.xlu0 %v575
    %v577 = vpop.xlane.xlu0 %576
    %v578 = vsel %vm562, %v559, -inf
    %579 = vmax.xlane.f32.xlu0 %v578
    %v580 = vpop.xlane.xlu0 %579
    %v581 = vsel %vm562, %v560, -inf
    %582 = vmax.xlane.f32.xlu0 %v581
    %v583 = vpop.xlane.xlu0 %582
    %v584 = vsel %vm562, %v561, -inf
    %585 = vmax.xlane.f32.xlu0 %v584
    %v586 = vpop.xlane.xlu0 %585
    %v587 = vsub.f32 %v554, %v565
    %v588 = vsub.f32 %v555, %v568
    %v589 = vsub.f32 %v556, %v571
    %v590 = vsub.f32 %v557, %v574
    %v591 = vsub.f32 %v558, %v577
    %v592 = vsub.f32 %v559, %v580
    %v593 = vsub.f32 %v560, %v583
    %v594 = vsub.f32 %v561, %v586
    %v595 = vmul.f32 %v587, 1.442695
    %v596 = vpow.pop %v595
    %v597 = vmul.f32 %v588, 1.442695
    %v598 = vpow.pop %v597
    %v599 = vmul.f32 %v589, 1.442695
    %v600 = vpow.pop %v599
    %v601 = vmul.f32 %v590, 1.442695
    %v602 = vpow.pop %v601
    %v603 = vmul.f32 %v591, 1.442695
    %v604 = vpow.pop %v603
    %v605 = vmul.f32 %v592, 1.442695
    %v606 = vpow.pop %v605
    %v607 = vmul.f32 %v593, 1.442695
    %v608 = vpow.pop %v607
    %v609 = vmul.f32 %v594, 1.442695
    %v610 = vpow.pop %v609
    %v611 = vsel %vm562, %v596, 0.0
    %612 = vadd.xlane.f32.xlu0 %v611
    %v613 = vpop.xlane.xlu0 %612
    %v614 = vsel %vm562, %v598, 0.0
    %615 = vadd.xlane.f32.xlu0 %v614
    %v616 = vpop.xlane.xlu0 %615
    %v617 = vsel %vm562, %v600, 0.0
    %618 = vadd.xlane.f32.xlu0 %v617
    %v619 = vpop.xlane.xlu0 %618
    %v620 = vsel %vm562, %v602, 0.0
    %621 = vadd.xlane.f32.xlu0 %v620
    %v622 = vpop.xlane.xlu0 %621
    %v623 = vsel %vm562, %v604, 0.0
    %624 = vadd.xlane.f32.xlu0 %v623
    %v625 = vpop.xlane.xlu0 %624
    %v626 = vsel %vm562, %v606, 0.0
    %627 = vadd.xlane.f32.xlu0 %v626
    %v628 = vpop.xlane.xlu0 %627
    %v629 = vsel %vm562, %v608, 0.0
    %630 = vadd.xlane.f32.xlu0 %v629
    %v631 = vpop.xlane.xlu0 %630
    %v632 = vsel %vm562, %v610, 0.0
    %633 = vadd.xlane.f32.xlu0 %v632
    %v634 = vpop.xlane.xlu0 %633
    %v635 = vrcp.pop %v613
    %v636 = vrcp.pop %v616
    %v637 = vrcp.pop %v619
    %v638 = vrcp.pop %v622
    %v639 = vrcp.pop %v625
    %v640 = vrcp.pop %v628
    %v641 = vrcp.pop %v631
    %v642 = vrcp.pop %v634
    %v643 = vmul.f32 %v596, %v635
    %v644 = vmul.f32 %v598, %v636
    %v645 = vmul.f32 %v600, %v637
    %v646 = vmul.f32 %v602, %v638
    %v647 = vmul.f32 %v604, %v639
    %v648 = vmul.f32 %v606, %v640
    %v649 = vmul.f32 %v608, %v641
    %v650 = vmul.f32 %v610, %v642
    %651 = vrot.lane.b32.xlu0 %v173, 64
    %v652 = vpop.permute.xlu0 %651
    %653 = vrot.lane.b32.xlu0 %v178, 64
    %v654 = vpop.permute.xlu0 %653
    %v658 = vsel %vm562, %v643, 0
    %v661 = vsel %vm562, %v644, 0
    %663 = vmatprep.subr.mxu0 0.0
    %664 = vmatpush1.msra.mxu0 %v652
    %665 = vmatprep.subr.mxu0 0.0
    %666 = vmatpush1.msra.mxu0 %v654
    %667 = vmatprep.subr.mxu0 0.0
    %668 = vmatpush1.msra.mxu0 0.0
    %669 = vmatprep.subr.mxu0 0.0
    %670 = vmatpush1.msra.mxu0 0.0
    %671 = vmatprep.subr.mxu0 0.0
    %672 = vmatpush1.msra.mxu0 0.0
    %673 = vmatprep.subr.mxu0 0.0
    %674 = vmatpush1.msra.mxu0 0.0
    %675 = vmatprep.subr.mxu0 0.0
    %676 = vmatpush1.msra.mxu0 0.0
    %677 = vmatprep.subr.mxu0 0.0
    %678 = vmatpush1.msra.mxu0 0.0
    %679 = vmatprep.subr.mxu0 0.0
    %680 = vmatpush1.msra.mxu0 0.0
    %681 = vmatprep.subr.mxu0 0.0
    %682 = vmatpush1.msra.mxu0 0.0
    %683 = vmatprep.subr.mxu0 0.0
    %684 = vmatpush1.msra.mxu0 0.0
    %685 = vmatprep.subr.mxu0 0.0
    %686 = vmatpush1.msra.mxu0 0.0
    %687 = vmatprep.subr.mxu0 0.0
    %688 = vmatpush1.msra.mxu0 0.0
    %689 = vmatprep.subr.mxu0 0.0
    %690 = vmatpush1.msra.mxu0 0.0
    %691 = vmatprep.subr.mxu0 0.0
    %692 = vmatpush1.msra.mxu0 0.0
    %693 = vmatprep.subr.mxu0 0.0
    %694 = vmatpush1.msra.mxu0 0.0
    %695 = vmatprep.subr.mxu0 0.0
    %696 = vmatpush1.msra.mxu0 0.0
    %697 = vmatprep.subr.mxu0 0.0
    %698 = vmatpush1.msra.mxu0 0.0
    %699 = vmatprep.subr.mxu0 0.0
    %700 = vmatpush1.msra.mxu0 0.0
    %701 = vmatprep.subr.mxu0 0.0
    %702 = vmatpush1.msra.mxu0 0.0
    %703 = vmatprep.subr.mxu0 0.0
    %704 = vmatpush1.msra.mxu0 0.0
    %705 = vmatprep.subr.mxu0 0.0
    %706 = vmatpush1.msra.mxu0 0.0
    %707 = vmatprep.subr.mxu0 0.0
    %708 = vmatpush1.msra.mxu0 0.0
    %709 = vmatprep.subr.mxu0 0.0
    %710 = vmatpush1.msra.mxu0 0.0
    %711 = vmatprep.subr.mxu0 0.0
    %712 = vmatpush1.msra.mxu0 0.0
    %713 = vmatprep.subr.mxu0 0.0
    %714 = vmatpush1.msra.mxu0 0.0
    %715 = vmatprep.subr.mxu0 0.0
    %716 = vmatpush1.msra.mxu0 0.0
    %717 = vmatprep.subr.mxu0 0.0
    %718 = vmatpush1.msra.mxu0 0.0
    %719 = vmatprep.subr.mxu0 0.0
    %720 = vmatpush1.msra.mxu0 0.0
    %721 = vmatprep.subr.mxu0 0.0
    %722 = vmatpush1.msra.mxu0 0.0
    %723 = vmatprep.subr.mxu0 0.0
    %724 = vmatpush1.msra.mxu0 0.0
    %725 = vmatprep.subr.mxu0 0.0
    %726 = vmatpush1.msra.mxu0 0.0
    %727 = vmatprep.mubr.f32.mxu0 0.0
    %728 = vmatmul.mubr.f32.gmra.mrb[0].mxu0 %v658
    %v729 = vpop.f32.mrb[0].mxu0
    %v730 = vadd.f32 0.0, %v729
    %v731 = vpop.f32.mrb[0].mxu0
    %732 = vmatprep.mubr.f32.mxu0 0.0
    %733 = vmatmul.mubr.f32.gmra.mrb[0].mxu0 %v661
    %v734 = vpop.f32.mrb[0].mxu0
    %v735 = vadd.f32 0.0, %v734
    %v736 = vpop.f32.mrb[0].mxu0
    %737 = vdwg.mxu0
    %738 = vrot.lane.b32.xlu0 %v184, 64
    %v739 = vpop.permute.xlu0 %738
    %740 = vrot.lane.b32.xlu0 %v186, 64
    %v741 = vpop.permute.xlu0 %740
    %v745 = vsel %vm562, %v645, 0
    %v748 = vsel %vm562, %v646, 0
    %750 = vmatprep.subr.mxu0 0.0
    %751 = vmatpush1.msra.mxu0 %v739
    %752 = vmatprep.subr.mxu0 0.0
    %753 = vmatpush1.msra.mxu0 %v741
    %754 = vmatprep.subr.mxu0 0.0
    %755 = vmatpush1.msra.mxu0 0.0
    %756 = vmatprep.subr.mxu0 0.0
    %757 = vmatpush1.msra.mxu0 0.0
    %758 = vmatprep.subr.mxu0 0.0
    %759 = vmatpush1.msra.mxu0 0.0
    %760 = vmatprep.subr.mxu0 0.0
    %761 = vmatpush1.msra.mxu0 0.0
    %762 = vmatprep.subr.mxu0 0.0
    %763 = vmatpush1.msra.mxu0 0.0
    %764 = vmatprep.subr.mxu0 0.0
    %765 = vmatpush1.msra.mxu0 0.0
    %766 = vmatprep.subr.mxu0 0.0
    %767 = vmatpush1.msra.mxu0 0.0
    %768 = vmatprep.subr.mxu0 0.0
    %769 = vmatpush1.msra.mxu0 0.0
    %770 = vmatprep.subr.mxu0 0.0
    %771 = vmatpush1.msra.mxu0 0.0
    %772 = vmatprep.subr.mxu0 0.0
    %773 = vmatpush1.msra.mxu0 0.0
    %774 = vmatprep.subr.mxu0 0.0
    %775 = vmatpush1.msra.mxu0 0.0
    %776 = vmatprep.subr.mxu0 0.0
    %777 = vmatpush1.msra.mxu0 0.0
    %778 = vmatprep.subr.mxu0 0.0
    %779 = vmatpush1.msra.mxu0 0.0
    %780 = vmatprep.subr.mxu0 0.0
    %781 = vmatpush1.msra.mxu0 0.0
    %782 = vmatprep.subr.mxu0 0.0
    %783 = vmatpush1.msra.mxu0 0.0
    %784 = vmatprep.subr.mxu0 0.0
    %785 = vmatpush1.msra.mxu0 0.0
    %786 = vmatprep.subr.mxu0 0.0
    %787 = vmatpush1.msra.mxu0 0.0
    %788 = vmatprep.subr.mxu0 0.0
    %789 = vmatpush1.msra.mxu0 0.0
    %790 = vmatprep.subr.mxu0 0.0
    %791 = vmatpush1.msra.mxu0 0.0
    %792 = vmatprep.subr.mxu0 0.0
    %793 = vmatpush1.msra.mxu0 0.0
    %794 = vmatprep.subr.mxu0 0.0
    %795 = vmatpush1.msra.mxu0 0.0
    %796 = vmatprep.subr.mxu0 0.0
    %797 = vmatpush1.msra.mxu0 0.0
    %798 = vmatprep.subr.mxu0 0.0
    %799 = vmatpush1.msra.mxu0 0.0
    %800 = vmatprep.subr.mxu0 0.0
    %801 = vmatpush1.msra.mxu0 0.0
    %802 = vmatprep.subr.mxu0 0.0
    %803 = vmatpush1.msra.mxu0 0.0
    %804 = vmatprep.subr.mxu0 0.0
    %805 = vmatpush1.msra.mxu0 0.0
    %806 = vmatprep.subr.mxu0 0.0
    %807 = vmatpush1.msra.mxu0 0.0
    %808 = vmatprep.subr.mxu0 0.0
    %809 = vmatpush1.msra.mxu0 0.0
    %810 = vmatprep.subr.mxu0 0.0
    %811 = vmatpush1.msra.mxu0 0.0
    %812 = vmatprep.subr.mxu0 0.0
    %813 = vmatpush1.msra.mxu0 0.0
    %814 = vmatprep.mubr.f32.mxu0 0.0
    %815 = vmatmul.mubr.f32.gmra.mrb[0].mxu0 %v745
    %v816 = vpop.f32.mrb[0].mxu0
    %v817 = vadd.f32 0.0, %v816
    %v818 = vpop.f32.mrb[0].mxu0
    %819 = vmatprep.mubr.f32.mxu0 0.0
    %820 = vmatmul.mubr.f32.gmra.mrb[0].mxu0 %v748
    %v821 = vpop.f32.mrb[0].mxu0
    %v822 = vadd.f32 0.0, %v821
    %v823 = vpop.f32.mrb[0].mxu0
    %824 = vdwg.mxu0
    %825 = vrot.lane.b32.xlu0 %v188, 64
    %v826 = vpop.permute.xlu0 %825
    %827 = vrot.lane.b32.xlu0 %v190, 64
    %v828 = vpop.permute.xlu0 %827
    %v832 = vsel %vm562, %v647, 0
    %v835 = vsel %vm562, %v648, 0
    %837 = vmatprep.subr.mxu0 0.0
    %838 = vmatpush1.msra.mxu0 %v826
    %839 = vmatprep.subr.mxu0 0.0
    %840 = vmatpush1.msra.mxu0 %v828
    %841 = vmatprep.subr.mxu0 0.0
    %842 = vmatpush1.msra.mxu0 0.0
    %843 = vmatprep.subr.mxu0 0.0
    %844 = vmatpush1.msra.mxu0 0.0
    %845 = vmatprep.subr.mxu0 0.0
    %846 = vmatpush1.msra.mxu0 0.0
    %847 = vmatprep.subr.mxu0 0.0
    %848 = vmatpush1.msra.mxu0 0.0
    %849 = vmatprep.subr.mxu0 0.0
    %850 = vmatpush1.msra.mxu0 0.0
    %851 = vmatprep.subr.mxu0 0.0
    %852 = vmatpush1.msra.mxu0 0.0
    %853 = vmatprep.subr.mxu0 0.0
    %854 = vmatpush1.msra.mxu0 0.0
    %855 = vmatprep.subr.mxu0 0.0
    %856 = vmatpush1.msra.mxu0 0.0
    %857 = vmatprep.subr.mxu0 0.0
    %858 = vmatpush1.msra.mxu0 0.0
    %859 = vmatprep.subr.mxu0 0.0
    %860 = vmatpush1.msra.mxu0 0.0
    %861 = vmatprep.subr.mxu0 0.0
    %862 = vmatpush1.msra.mxu0 0.0
    %863 = vmatprep.subr.mxu0 0.0
    %864 = vmatpush1.msra.mxu0 0.0
    %865 = vmatprep.subr.mxu0 0.0
    %866 = vmatpush1.msra.mxu0 0.0
    %867 = vmatprep.subr.mxu0 0.0
    %868 = vmatpush1.msra.mxu0 0.0
    %869 = vmatprep.subr.mxu0 0.0
    %870 = vmatpush1.msra.mxu0 0.0
    %871 = vmatprep.subr.mxu0 0.0
    %872 = vmatpush1.msra.mxu0 0.0
    %873 = vmatprep.subr.mxu0 0.0
    %874 = vmatpush1.msra.mxu0 0.0
    %875 = vmatprep.subr.mxu0 0.0
    %876 = vmatpush1.msra.mxu0 0.0
    %877 = vmatprep.subr.mxu0 0.0
    %878 = vmatpush1.msra.mxu0 0.0
    %879 = vmatprep.subr.mxu0 0.0
    %880 = vmatpush1.msra.mxu0 0.0
    %881 = vmatprep.subr.mxu0 0.0
    %882 = vmatpush1.msra.mxu0 0.0
    %883 = vmatprep.subr.mxu0 0.0
    %884 = vmatpush1.msra.mxu0 0.0
    %885 = vmatprep.subr.mxu0 0.0
    %886 = vmatpush1.msra.mxu0 0.0
    %887 = vmatprep.subr.mxu0 0.0
    %888 = vmatpush1.msra.mxu0 0.0
    %889 = vmatprep.subr.mxu0 0.0
    %890 = vmatpush1.msra.mxu0 0.0
    %891 = vmatprep.subr.mxu0 0.0
    %892 = vmatpush1.msra.mxu0 0.0
    %893 = vmatprep.subr.mxu0 0.0
    %894 = vmatpush1.msra.mxu0 0.0
    %895 = vmatprep.subr.mxu0 0.0
    %896 = vmatpush1.msra.mxu0 0.0
    %897 = vmatprep.subr.mxu0 0.0
    %898 = vmatpush1.msra.mxu0 0.0
    %899 = vmatprep.subr.mxu0 0.0
    %900 = vmatpush1.msra.mxu0 0.0
    %901 = vmatprep.mubr.f32.mxu0 0.0
    %902 = vmatmul.mubr.f32.gmra.mrb[0].mxu0 %v832
    %v903 = vpop.f32.mrb[0].mxu0
    %v904 = vadd.f32 0.0, %v903
    %v905 = vpop.f32.mrb[0].mxu0
    %906 = vmatprep.mubr.f32.mxu0 0.0
    %907 = vmatmul.mubr.f32.gmra.mrb[0].mxu0 %v835
    %v908 = vpop.f32.mrb[0].mxu0
    %v909 = vadd.f32 0.0, %v908
    %v910 = vpop.f32.mrb[0].mxu0
    %911 = vdwg.mxu0
    %912 = vrot.lane.b32.xlu0 %v192, 64
    %v913 = vpop.permute.xlu0 %912
    %914 = vrot.lane.b32.xlu0 %v194, 64
    %v915 = vpop.permute.xlu0 %914
    %v919 = vsel %vm562, %v649, 0
    %v922 = vsel %vm562, %v650, 0
    %924 = vmatprep.subr.mxu0 0.0
    %925 = vmatpush1.msra.mxu0 %v913
    %926 = vmatprep.subr.mxu0 0.0
    %927 = vmatpush1.msra.mxu0 %v915
    %928 = vmatprep.subr.mxu0 0.0
    %929 = vmatpush1.msra.mxu0 0.0
    %930 = vmatprep.subr.mxu0 0.0
    %931 = vmatpush1.msra.mxu0 0.0
    %932 = vmatprep.subr.mxu0 0.0
    %933 = vmatpush1.msra.mxu0 0.0
    %934 = vmatprep.subr.mxu0 0.0
    %935 = vmatpush1.msra.mxu0 0.0
    %936 = vmatprep.subr.mxu0 0.0
    %937 = vmatpush1.msra.mxu0 0.0
    %938 = vmatprep.subr.mxu0 0.0
    %939 = vmatpush1.msra.mxu0 0.0
    %940 = vmatprep.subr.mxu0 0.0
    %941 = vmatpush1.msra.mxu0 0.0
    %942 = vmatprep.subr.mxu0 0.0
    %943 = vmatpush1.msra.mxu0 0.0
    %944 = vmatprep.subr.mxu0 0.0
    %945 = vmatpush1.msra.mxu0 0.0
    %946 = vmatprep.subr.mxu0 0.0
    %947 = vmatpush1.msra.mxu0 0.0
    %948 = vmatprep.subr.mxu0 0.0
    %949 = vmatpush1.msra.mxu0 0.0
    %950 = vmatprep.subr.mxu0 0.0
    %951 = vmatpush1.msra.mxu0 0.0
    %952 = vmatprep.subr.mxu0 0.0
    %953 = vmatpush1.msra.mxu0 0.0
    %954 = vmatprep.subr.mxu0 0.0
    %955 = vmatpush1.msra.mxu0 0.0
    %956 = vmatprep.subr.mxu0 0.0
    %957 = vmatpush1.msra.mxu0 0.0
    %958 = vmatprep.subr.mxu0 0.0
    %959 = vmatpush1.msra.mxu0 0.0
    %960 = vmatprep.subr.mxu0 0.0
    %961 = vmatpush1.msra.mxu0 0.0
    %962 = vmatprep.subr.mxu0 0.0
    %963 = vmatpush1.msra.mxu0 0.0
    %964 = vmatprep.subr.mxu0 0.0
    %965 = vmatpush1.msra.mxu0 0.0
    %966 = vmatprep.subr.mxu0 0.0
    %967 = vmatpush1.msra.mxu0 0.0
    %968 = vmatprep.subr.mxu0 0.0
    %969 = vmatpush1.msra.mxu0 0.0
    %970 = vmatprep.subr.mxu0 0.0
    %971 = vmatpush1.msra.mxu0 0.0
    %972 = vmatprep.subr.mxu0 0.0
    %973 = vmatpush1.msra.mxu0 0.0
    %974 = vmatprep.subr.mxu0 0.0
    %975 = vmatpush1.msra.mxu0 0.0
    %976 = vmatprep.subr.mxu0 0.0
    %977 = vmatpush1.msra.mxu0 0.0
    %978 = vmatprep.subr.mxu0 0.0
    %979 = vmatpush1.msra.mxu0 0.0
    %980 = vmatprep.subr.mxu0 0.0
    %981 = vmatpush1.msra.mxu0 0.0
    %982 = vmatprep.subr.mxu0 0.0
    %983 = vmatpush1.msra.mxu0 0.0
    %984 = vmatprep.subr.mxu0 0.0
    %985 = vmatpush1.msra.mxu0 0.0
    %986 = vmatprep.subr.mxu0 0.0
    %987 = vmatpush1.msra.mxu0 0.0
    %988 = vmatprep.mubr.f32.mxu0 0.0
    %989 = vmatmul.mubr.f32.gmra.mrb[0].mxu0 %v919
    %v990 = vpop.f32.mrb[0].mxu0
    %v991 = vadd.f32 0.0, %v990
    %v992 = vpop.f32.mrb[0].mxu0
    %993 = vmatprep.mubr.f32.mxu0 0.0
    %994 = vmatmul.mubr.f32.gmra.mrb[0].mxu0 %v922
    %v995 = vpop.f32.mrb[0].mxu0
    %v996 = vadd.f32 0.0, %v995
    %v997 = vpop.f32.mrb[0].mxu0
    %998 = vdwg.mxu0
    %v999 = vld [vmem:[#allocation8] sm:$0xff]
    %v1000 = vld [vmem:[#allocation8 + $0x8] sm:$0xff]
    %v1001 = vld [vmem:[#allocation8 + $0x10] sm:$0xff]
    %v1002 = vld [vmem:[#allocation8 + $0x18] sm:$0xff]
    %v1004 = vsel %vm199, %v730, 0
    %v1007 = vsel %vm199, %v735, 0
    %1009 = vmatprep.subr.mxu0 0.0
    %1010 = vmatpush1.msra.mxu0 %v999
    %1011 = vmatprep.subr.mxu0 0.0
    %1012 = vmatpush1.msra.mxu0 0.0
    %1013 = vmatprep.subr.mxu0 0.0
    %1014 = vmatpush1.msra.mxu0 0.0
    %1015 = vmatprep.subr.mxu0 0.0
    %1016 = vmatpush1.msra.mxu0 0.0
    %1017 = vmatprep.subr.mxu0 0.0
    %1018 = vmatpush1.msra.mxu0 0.0
    %1019 = vmatprep.subr.mxu0 0.0
    %1020 = vmatpush1.msra.mxu0 0.0
    %1021 = vmatprep.subr.mxu0 0.0
    %1022 = vmatpush1.msra.mxu0 0.0
    %1023 = vmatprep.subr.mxu0 0.0
    %1024 = vmatpush1.msra.mxu0 0.0
    %1025 = vmatprep.subr.mxu0 0.0
    %1026 = vmatpush1.msra.mxu0 0.0
    %1027 = vmatprep.subr.mxu0 0.0
    %1028 = vmatpush1.msra.mxu0 0.0
    %1029 = vmatprep.subr.mxu0 0.0
    %1030 = vmatpush1.msra.mxu0 0.0
    %1031 = vmatprep.subr.mxu0 0.0
    %1032 = vmatpush1.msra.mxu0 0.0
    %1033 = vmatprep.subr.mxu0 0.0
    %1034 = vmatpush1.msra.mxu0 0.0
    %1035 = vmatprep.subr.mxu0 0.0
    %1036 = vmatpush1.msra.mxu0 0.0
    %1037 = vmatprep.subr.mxu0 0.0
    %1038 = vmatpush1.msra.mxu0 0.0
    %1039 = vmatprep.subr.mxu0 0.0
    %1040 = vmatpush1.msra.mxu0 0.0
    %1041 = vmatprep.subr.mxu0 0.0
    %1042 = vmatpush1.msra.mxu0 0.0
    %1043 = vmatprep.subr.mxu0 0.0
    %1044 = vmatpush1.msra.mxu0 0.0
    %1045 = vmatprep.subr.mxu0 0.0
    %1046 = vmatpush1.msra.mxu0 0.0
    %1047 = vmatprep.subr.mxu0 0.0
    %1048 = vmatpush1.msra.mxu0 0.0
    %1049 = vmatprep.subr.mxu0 0.0
    %1050 = vmatpush1.msra.mxu0 0.0
    %1051 = vmatprep.subr.mxu0 0.0
    %1052 = vmatpush1.msra.mxu0 0.0
    %1053 = vmatprep.subr.mxu0 0.0
    %1054 = vmatpush1.msra.mxu0 0.0
    %1055 = vmatprep.subr.mxu0 0.0
    %1056 = vmatpush1.msra.mxu0 0.0
    %1057 = vmatprep.subr.mxu0 0.0
    %1058 = vmatpush1.msra.mxu0 0.0
    %1059 = vmatprep.subr.mxu0 0.0
    %1060 = vmatpush1.msra.mxu0 0.0
    %1061 = vmatprep.subr.mxu0 0.0
    %1062 = vmatpush1.msra.mxu0 0.0
    %1063 = vmatprep.subr.mxu0 0.0
    %1064 = vmatpush1.msra.mxu0 0.0
    %1065 = vmatprep.subr.mxu0 0.0
    %1066 = vmatpush1.msra.mxu0 0.0
    %1067 = vmatprep.subr.mxu0 0.0
    %1068 = vmatpush1.msra.mxu0 0.0
    %1069 = vmatprep.subr.mxu0 0.0
    %1070 = vmatpush1.msra.mxu0 0.0
    %1071 = vmatprep.subr.mxu0 0.0
    %1072 = vmatpush1.msra.mxu0 0.0
    %1073 = vmatprep.mubr.f32.mxu0 0.0
    %1074 = vmatmul.mubr.f32.gmra.mrb[0].mxu0 %v1004
    %v1075 = vpop.f32.mrb[0].mxu0
    %v1076 = vadd.f32 0.0, %v1075
    %v1077 = vpop.f32.mrb[0].mxu0
    %1078 = vmatprep.mubr.f32.mxu0 0.0
    %1079 = vmatmul.mubr.f32.gmra.mrb[0].mxu0 %v1007
    %v1080 = vpop.f32.mrb[0].mxu0
    %v1081 = vadd.f32 0.0, %v1080
    %v1082 = vpop.f32.mrb[0].mxu0
    %1083 = vdwg.mxu0
    %v1085 = vsel %vm199, %v817, 0
    %v1088 = vsel %vm199, %v822, 0
    %1090 = vmatprep.subr.mxu0 0.0
    %1091 = vmatpush1.msra.mxu0 %v1000
    %1092 = vmatprep.subr.mxu0 0.0
    %1093 = vmatpush1.msra.mxu0 0.0
    %1094 = vmatprep.subr.mxu0 0.0
    %1095 = vmatpush1.msra.mxu0 0.0
    %1096 = vmatprep.subr.mxu0 0.0
    %1097 = vmatpush1.msra.mxu0 0.0
    %1098 = vmatprep.subr.mxu0 0.0
    %1099 = vmatpush1.msra.mxu0 0.0
    %1100 = vmatprep.subr.mxu0 0.0
    %1101 = vmatpush1.msra.mxu0 0.0
    %1102 = vmatprep.subr.mxu0 0.0
    %1103 = vmatpush1.msra.mxu0 0.0
    %1104 = vmatprep.subr.mxu0 0.0
    %1105 = vmatpush1.msra.mxu0 0.0
    %1106 = vmatprep.subr.mxu0 0.0
    %1107 = vmatpush1.msra.mxu0 0.0
    %1108 = vmatprep.subr.mxu0 0.0
    %1109 = vmatpush1.msra.mxu0 0.0
    %1110 = vmatprep.subr.mxu0 0.0
    %1111 = vmatpush1.msra.mxu0 0.0
    %1112 = vmatprep.subr.mxu0 0.0
    %1113 = vmatpush1.msra.mxu0 0.0
    %1114 = vmatprep.subr.mxu0 0.0
    %1115 = vmatpush1.msra.mxu0 0.0
    %1116 = vmatprep.subr.mxu0 0.0
    %1117 = vmatpush1.msra.mxu0 0.0
    %1118 = vmatprep.subr.mxu0 0.0
    %1119 = vmatpush1.msra.mxu0 0.0
    %1120 = vmatprep.subr.mxu0 0.0
    %1121 = vmatpush1.msra.mxu0 0.0
    %1122 = vmatprep.subr.mxu0 0.0
    %1123 = vmatpush1.msra.mxu0 0.0
    %1124 = vmatprep.subr.mxu0 0.0
    %1125 = vmatpush1.msra.mxu0 0.0
    %1126 = vmatprep.subr.mxu0 0.0
    %1127 = vmatpush1.msra.mxu0 0.0
    %1128 = vmatprep.subr.mxu0 0.0
    %1129 = vmatpush1.msra.mxu0 0.0
    %1130 = vmatprep.subr.mxu0 0.0
    %1131 = vmatpush1.msra.mxu0 0.0
    %1132 = vmatprep.subr.mxu0 0.0
    %1133 = vmatpush1.msra.mxu0 0.0
    %1134 = vmatprep.subr.mxu0 0.0
    %1135 = vmatpush1.msra.mxu0 0.0
    %1136 = vmatprep.subr.mxu0 0.0
    %1137 = vmatpush1.msra.mxu0 0.0
    %1138 = vmatprep.subr.mxu0 0.0
    %1139 = vmatpush1.msra.mxu0 0.0
    %1140 = vmatprep.subr.mxu0 0.0
    %1141 = vmatpush1.msra.mxu0 0.0
    %1142 = vmatprep.subr.mxu0 0.0
    %1143 = vmatpush1.msra.mxu0 0.0
    %1144 = vmatprep.subr.mxu0 0.0
    %1145 = vmatpush1.msra.mxu0 0.0
    %1146 = vmatprep.subr.mxu0 0.0
    %1147 = vmatpush1.msra.mxu0 0.0
    %1148 = vmatprep.subr.mxu0 0.0
    %1149 = vmatpush1.msra.mxu0 0.0
    %1150 = vmatprep.subr.mxu0 0.0
    %1151 = vmatpush1.msra.mxu0 0.0
    %1152 = vmatprep.subr.mxu0 0.0
    %1153 = vmatpush1.msra.mxu0 0.0
    %1154 = vmatprep.mubr.f32.mxu0 0.0
    %1155 = vmatmul.mubr.f32.gmra.mrb[0].mxu0 %v1085
    %v1156 = vpop.f32.mrb[0].mxu0
    %v1157 = vadd.f32 0.0, %v1156
    %v1158 = vpop.f32.mrb[0].mxu0
    %1159 = vmatprep.mubr.f32.mxu0 0.0
    %1160 = vmatmul.mubr.f32.gmra.mrb[0].mxu0 %v1088
    %v1161 = vpop.f32.mrb[0].mxu0
    %v1162 = vadd.f32 0.0, %v1161
    %v1163 = vpop.f32.mrb[0].mxu0
    %1164 = vdwg.mxu0
    %v1166 = vsel %vm199, %v904, 0
    %v1169 = vsel %vm199, %v909, 0
    %1171 = vmatprep.subr.mxu0 0.0
    %1172 = vmatpush1.msra.mxu0 %v1001
    %1173 = vmatprep.subr.mxu0 0.0
    %1174 = vmatpush1.msra.mxu0 0.0
    %1175 = vmatprep.subr.mxu0 0.0
    %1176 = vmatpush1.msra.mxu0 0.0
    %1177 = vmatprep.subr.mxu0 0.0
    %1178 = vmatpush1.msra.mxu0 0.0
    %1179 = vmatprep.subr.mxu0 0.0
    %1180 = vmatpush1.msra.mxu0 0.0
    %1181 = vmatprep.subr.mxu0 0.0
    %1182 = vmatpush1.msra.mxu0 0.0
    %1183 = vmatprep.subr.mxu0 0.0
    %1184 = vmatpush1.msra.mxu0 0.0
    %1185 = vmatprep.subr.mxu0 0.0
    %1186 = vmatpush1.msra.mxu0 0.0
    %1187 = vmatprep.subr.mxu0 0.0
    %1188 = vmatpush1.msra.mxu0 0.0
    %1189 = vmatprep.subr.mxu0 0.0
    %1190 = vmatpush1.msra.mxu0 0.0
    %1191 = vmatprep.subr.mxu0 0.0
    %1192 = vmatpush1.msra.mxu0 0.0
    %1193 = vmatprep.subr.mxu0 0.0
    %1194 = vmatpush1.msra.mxu0 0.0
    %1195 = vmatprep.subr.mxu0 0.0
    %1196 = vmatpush1.msra.mxu0 0.0
    %1197 = vmatprep.subr.mxu0 0.0
    %1198 = vmatpush1.msra.mxu0 0.0
    %1199 = vmatprep.subr.mxu0 0.0
    %1200 = vmatpush1.msra.mxu0 0.0
    %1201 = vmatprep.subr.mxu0 0.0
    %1202 = vmatpush1.msra.mxu0 0.0
    %1203 = vmatprep.subr.mxu0 0.0
    %1204 = vmatpush1.msra.mxu0 0.0
    %1205 = vmatprep.subr.mxu0 0.0
    %1206 = vmatpush1.msra.mxu0 0.0
    %1207 = vmatprep.subr.mxu0 0.0
    %1208 = vmatpush1.msra.mxu0 0.0
    %1209 = vmatprep.subr.mxu0 0.0
    %1210 = vmatpush1.msra.mxu0 0.0
    %1211 = vmatprep.subr.mxu0 0.0
    %1212 = vmatpush1.msra.mxu0 0.0
    %1213 = vmatprep.subr.mxu0 0.0
    %1214 = vmatpush1.msra.mxu0 0.0
    %1215 = vmatprep.subr.mxu0 0.0
    %1216 = vmatpush1.msra.mxu0 0.0
    %1217 = vmatprep.subr.mxu0 0.0
    %1218 = vmatpush1.msra.mxu0 0.0
    %1219 = vmatprep.subr.mxu0 0.0
    %1220 = vmatpush1.msra.mxu0 0.0
    %1221 = vmatprep.subr.mxu0 0.0
    %1222 = vmatpush1.msra.mxu0 0.0
    %1223 = vmatprep.subr.mxu0 0.0
    %1224 = vmatpush1.msra.mxu0 0.0
    %1225 = vmatprep.subr.mxu0 0.0
    %1226 = vmatpush1.msra.mxu0 0.0
    %1227 = vmatprep.subr.mxu0 0.0
    %1228 = vmatpush1.msra.mxu0 0.0
    %1229 = vmatprep.subr.mxu0 0.0
    %1230 = vmatpush1.msra.mxu0 0.0
    %1231 = vmatprep.subr.mxu0 0.0
    %1232 = vmatpush1.msra.mxu0 0.0
    %1233 = vmatprep.subr.mxu0 0.0
    %1234 = vmatpush1.msra.mxu0 0.0
    %1235 = vmatprep.mubr.f32.mxu0 0.0
    %1236 = vmatmul.mubr.f32.gmra.mrb[0].mxu0 %v1166
    %v1237 = vpop.f32.mrb[0].mxu0
    %v1238 = vadd.f32 0.0, %v1237
    %v1239 = vpop.f32.mrb[0].mxu0
    %1240 = vmatprep.mubr.f32.mxu0 0.0
    %1241 = vmatmul.mubr.f32.gmra.mrb[0].mxu0 %v1169
    %v1242 = vpop.f32.mrb[0].mxu0
    %v1243 = vadd.f32 0.0, %v1242
    %v1244 = vpop.f32.mrb[0].mxu0
    %1245 = vdwg.mxu0
    %v1247 = vsel %vm199, %v991, 0
    %v1250 = vsel %vm199, %v996, 0
    %1252 = vmatprep.subr.mxu0 0.0
    %1253 = vmatpush1.msra.mxu0 %v1002
    %1254 = vmatprep.subr.mxu0 0.0
    %1255 = vmatpush1.msra.mxu0 0.0
    %1256 = vmatprep.subr.mxu0 0.0
    %1257 = vmatpush1.msra.mxu0 0.0
    %1258 = vmatprep.subr.mxu0 0.0
    %1259 = vmatpush1.msra.mxu0 0.0
    %1260 = vmatprep.subr.mxu0 0.0
    %1261 = vmatpush1.msra.mxu0 0.0
    %1262 = vmatprep.subr.mxu0 0.0
    %1263 = vmatpush1.msra.mxu0 0.0
    %1264 = vmatprep.subr.mxu0 0.0
    %1265 = vmatpush1.msra.mxu0 0.0
    %1266 = vmatprep.subr.mxu0 0.0
    %1267 = vmatpush1.msra.mxu0 0.0
    %1268 = vmatprep.subr.mxu0 0.0
    %1269 = vmatpush1.msra.mxu0 0.0
    %1270 = vmatprep.subr.mxu0 0.0
    %1271 = vmatpush1.msra.mxu0 0.0
    %1272 = vmatprep.subr.mxu0 0.0
    %1273 = vmatpush1.msra.mxu0 0.0
    %1274 = vmatprep.subr.mxu0 0.0
    %1275 = vmatpush1.msra.mxu0 0.0
    %1276 = vmatprep.subr.mxu0 0.0
    %1277 = vmatpush1.msra.mxu0 0.0
    %1278 = vmatprep.subr.mxu0 0.0
    %1279 = vmatpush1.msra.mxu0 0.0
    %1280 = vmatprep.subr.mxu0 0.0
    %1281 = vmatpush1.msra.mxu0 0.0
    %1282 = vmatprep.subr.mxu0 0.0
    %1283 = vmatpush1.msra.mxu0 0.0
    %1284 = vmatprep.subr.mxu0 0.0
    %1285 = vmatpush1.msra.mxu0 0.0
    %1286 = vmatprep.subr.mxu0 0.0
    %1287 = vmatpush1.msra.mxu0 0.0
    %1288 = vmatprep.subr.mxu0 0.0
    %1289 = vmatpush1.msra.mxu0 0.0
    %1290 = vmatprep.subr.mxu0 0.0
    %1291 = vmatpush1.msra.mxu0 0.0
    %1292 = vmatprep.subr.mxu0 0.0
    %1293 = vmatpush1.msra.mxu0 0.0
    %1294 = vmatprep.subr.mxu0 0.0
    %1295 = vmatpush1.msra.mxu0 0.0
    %1296 = vmatprep.subr.mxu0 0.0
    %1297 = vmatpush1.msra.mxu0 0.0
    %1298 = vmatprep.subr.mxu0 0.0
    %1299 = vmatpush1.msra.mxu0 0.0
    %1300 = vmatprep.subr.mxu0 0.0
    %1301 = vmatpush1.msra.mxu0 0.0
    %1302 = vmatprep.subr.mxu0 0.0
    %1303 = vmatpush1.msra.mxu0 0.0
    %1304 = vmatprep.subr.mxu0 0.0
    %1305 = vmatpush1.msra.mxu0 0.0
    %1306 = vmatprep.subr.mxu0 0.0
    %1307 = vmatpush1.msra.mxu0 0.0
    %1308 = vmatprep.subr.mxu0 0.0
    %1309 = vmatpush1.msra.mxu0 0.0
    %1310 = vmatprep.subr.mxu0 0.0
    %1311 = vmatpush1.msra.mxu0 0.0
    %1312 = vmatprep.subr.mxu0 0.0
    %1313 = vmatpush1.msra.mxu0 0.0
    %1314 = vmatprep.subr.mxu0 0.0
    %1315 = vmatpush1.msra.mxu0 0.0
    %1316 = vmatprep.mubr.f32.mxu0 0.0
    %1317 = vmatmul.mubr.f32.gmra.mrb[0].mxu0 %v1247
    %v1318 = vpop.f32.mrb[0].mxu0
    %v1319 = vadd.f32 0.0, %v1318
    %v1320 = vpop.f32.mrb[0].mxu0
    %1321 = vmatprep.mubr.f32.mxu0 0.0
    %1322 = vmatmul.mubr.f32.gmra.mrb[0].mxu0 %v1250
    %v1323 = vpop.f32.mrb[0].mxu0
    %v1324 = vadd.f32 0.0, %v1323
    %v1325 = vpop.f32.mrb[0].mxu0
    %1326 = vdwg.mxu0
    %v1327 = vsel %vm99, %v1076, 0.0
    %v1328 = vsel %vm99, %v1157, 0.0
    %v1329 = vadd.f32 %v1327, %v1328
    %v1330 = vsel %vm99, %v1238, 0.0
    %v1331 = vadd.f32 %v1329, %v1330
    %v1332 = vsel %vm99, %v1319, 0.0
    %v1333 = vadd.f32 %v1331, %v1332
    %v1334 = vsel %vm99, %v1081, 0.0
    %v1335 = vsel %vm99, %v1162, 0.0
    %v1336 = vadd.f32 %v1334, %v1335
    %v1337 = vsel %vm99, %v1243, 0.0
    %v1338 = vadd.f32 %v1336, %v1337
    %v1339 = vsel %vm99, %v1324, 0.0
    %v1340 = vadd.f32 %v1338, %v1339
    %v1341 = vld [vmem:[%s5] sm:$0x1]
    %v1343 = vlaneseq
    %v1344 = vshrl.u32 %v1343, 7
    %v1345 = vsub.s32 0, %v1344
    %v1346 = vrot.slane %v1341, %v1345
    %v1348 = vadd.f32 %v1333, %v1346
    %v1349 = vadd.f32 %v1340, %v1346
    %1350 = vst.msk [vmem:[#allocation10] sm:$0xff] %vm99, %v1348
    %1351 = vst.msk [vmem:[#allocation10 + $0x8] sm:$0xff] %vm99, %v1349
    // Predicated region
    $region46: #{tpu_custom_call.1} parent=1 // pred_check
      _
    $region47: #{tpu_custom_call.1} parent=1 // pred_check_branch
      %1353 = sbr.rel (0) target = $region49
    $region48: #{tpu_custom_call.1} parent=1 // pred_region
      %s1355 = ssub.s32 256, 256
      %1356 = vsyncadd [#allocation4], %s1355
      %s1357 = sshll.u32 [#allocation10], 4
      %s1358 = int_to_ptr.vmem [resolvable:$true] %s1357
      %1363 = dma.vmem_to_hbm [thread:$0]  %s1358, 256, %s7, [#allocation4], 128, 128, 8
    $region49: #{tpu_custom_call.1} parent=1 // pred_fallthru
      _
    // Predicated region
    $region50: #{tpu_custom_call.1} parent=1 // pred_check
      _
    $region51: #{tpu_custom_call.1} parent=1 // pred_check_branch
      %1365 = sbr.rel (0) target = $region53
    $region52: #{tpu_custom_call.1} parent=1 // pred_region
      %1366 = dma.done [#allocation4], 256
    $region53: #{tpu_custom_call.1} parent=1 // pred_fallthru
      _
    %1367 = vsyncpa [#allocation3], 1
    %1368 = vsyncpa [#allocation6], 1
    %1369 = vsyncpa [#allocation9], 1
    %1370 = vsyncpa [#allocation4], 1

</llo_original>
